<compile_context>
chip_gen: v6e
topology: v6e:2x2x1
jax: 0.10.0
libtpu: 0.0.40
codegen_flags: <defaults>
</compile_context>

<pallas_src>
import functools

import jax
import jax.numpy as jnp
from jax import lax
from jax.experimental import pallas as pl
from jax.experimental.pallas import tpu as pltpu


def cbam_kernel(x_ref, w1t_ref, w2t_ref, mask_ref, cw_ref, out_ref, *,
                H, W, CK, padded):
    # x_ref: (TB, C, HWp) tile; lane axis = flattened (padded) spatial dim.
    TB, C, HWp = x_ref.shape
    nck = C // CK
    inv_hw = 1.0 / float(H * W)
    inv_c = 1.0 / float(C)

    mk = mask_ref[...]                              # (8, HWp) f32 constants
    colm_m1 = mk[0:1, :]                            # tap at col j-1 is valid
    colm_p1 = mk[1:2, :]                            # tap at col j+1 is valid
    rowm_m1 = mk[2:3, :]                            # tap at row i-1 is valid
    rowm_p1 = mk[3:4, :]                            # tap at row i+1 is valid
    negpad = mk[4:5, :].reshape(1, 1, HWp)          # 0 valid lanes, -1e30 pad

    # ---- Pass A: fused channel max+avg pooling (one read per chunk) -------
    mx_parts, av_parts = [], []
    for ci in range(nck):
        c0 = ci * CK
        chunk = x_ref[:, c0:c0 + CK, :].astype(jnp.float32)   # (TB, CK, HWp)
        chunk_m = chunk + negpad if padded else chunk
        mx_parts.append(jnp.max(chunk_m, axis=2))             # (TB, CK)
        av_parts.append(jnp.sum(chunk, axis=2))               # (TB, CK)
    mx = mx_parts[0] if nck == 1 else jnp.concatenate(mx_parts, axis=1)
    av = (av_parts[0] if nck == 1 else jnp.concatenate(av_parts, axis=1)) * inv_hw

    # ---- Channel attention MLP: sigmoid(fc(avg) + fc(max)) ----------------
    pooled = jnp.concatenate([av, mx], axis=0)                # (2*TB, C)
    h = jnp.maximum(
        jnp.dot(pooled, w1t_ref[...], preferred_element_type=jnp.float32), 0.0)
    fc = jnp.dot(h, w2t_ref[...], preferred_element_type=jnp.float32)
    ca = jax.nn.sigmoid(fc[:TB] + fc[TB:])                    # (TB, C)

    # ---- Pass B: fused spatial max+avg pooling of y = x*ca (not stored) ---
    s_max = None
    s_sum = None
    for ci in range(nck):
        c0 = ci * CK
        chunk = x_ref[:, c0:c0 + CK, :].astype(jnp.float32)
        ych = chunk * ca[:, c0:c0 + CK][:, :, None]           # (TB, CK, HWp)
        pm = jnp.max(ych, axis=1)                             # (TB, HWp)
        ps = jnp.sum(ych, axis=1)
        s_max = pm if s_max is None else jnp.maximum(s_max, pm)
        s_sum = ps if s_sum is None else s_sum + ps
    s_avg = s_sum * inv_c

    # ---- 3x3 "same" conv: 6 XLU rolls + per-row VPU FMAs ------------------
    def rolled(v, shift):
        s = shift % HWp
        return v if s == 0 else pltpu.roll(v, s, 1)

    # column-shifted, column-masked pooled maps (4 rolls)
    smm = rolled(s_max, 1) * colm_m1            # reads column j-1
    smp = rolled(s_max, HWp - 1) * colm_p1      # reads column j+1
    svm = rolled(s_avg, 1) * colm_m1
    svp = rolled(s_avg, HWp - 1) * colm_p1

    def w_max(di, dj):                          # conv input channel 0 = max
        return cw_ref[(di + 1) * 3 + (dj + 1)]

    def w_avg(di, dj):                          # conv input channel 1 = avg
        return cw_ref[9 + (di + 1) * 3 + (dj + 1)]

    def row_partial(di):                        # pure VPU mul/adds
        return (w_max(di, -1) * smm + w_max(di, 0) * s_max + w_max(di, 1) * smp +
                w_avg(di, -1) * svm + w_avg(di, 0) * s_avg + w_avg(di, 1) * svp)

    conv = row_partial(0)
    conv = conv + rolled(row_partial(-1), W) * rowm_m1        # reads row i-1
    conv = conv + rolled(row_partial(1), HWp - W) * rowm_p1   # reads row i+1
    sa = jax.nn.sigmoid(conv)                                 # (TB, HWp)

    # ---- Pass C: out = x * ca * sa, recomputed & streamed (no y tile) -----
    for ci in range(nck):
        c0 = ci * CK
        chunk = x_ref[:, c0:c0 + CK, :].astype(jnp.float32)
        scaled = chunk * ca[:, c0:c0 + CK][:, :, None]
        out_ref[:, c0:c0 + CK, :] = (scaled * sa[:, None, :]).astype(out_ref.dtype)


def _pick_batch_tile(B, in_bytes_per_img, f32_bytes_per_img, vmem_budget,
                     min_steps, max_block_bytes):
    """Largest batch tile whose double-buffered plan fits, keeping >= min_steps."""
    divisors = [d for d in range(1, B + 1) if B % d == 0]

    def fits(tb):
        # double-buffered in+out blocks plus headroom for ~2 tile-sized f32
        # temporaries (the kernel upcasts internally).
        return (tb * in_bytes_per_img <= max_block_bytes and
                4 * tb * in_bytes_per_img + 2 * tb * f32_bytes_per_img
                <= vmem_budget)

    good = [d for d in divisors if fits(d)]
    if not good:
        return 1
    eff_min = min(min_steps, B)
    pipelined = [d for d in good if B // d >= eff_min]
    return max(pipelined) if pipelined else max(good)


def _pick_channel_chunk(TB, C, HWp, chunk_budget=256 * 1024, max_nck=8):
    """Chunk C so each streamed chunk stays vreg-friendly; <= 8 static chunks."""
    nck = 1
    for cand in (2, 4, 8):
        if cand > max_nck or C % cand != 0:
            break
        if TB * (C // nck) * HWp * 4 <= chunk_budget:
            break
        nck = cand
    return C // nck


def cbam_pallas(x, w1, w2, conv_w):
    """x: (B,C,H,W). w1: (C//r, C), w2: (C, C//r), conv_w: (1,2,3,3) [max, avg]."""
    B, C, H, W = x.shape
    HW = H * W
    HWp = max(128, ((HW + 127) // 128) * 128)     # lane-dense spatial axis
    padded = HWp != HW
    Cr = w1.shape[0]

    x_flat = x.reshape(B, C, HW)
    if padded:
        x_flat = jnp.pad(x_flat, ((0, 0), (0, 0), (0, HWp - HW)))
    w1t = jnp.transpose(w1).astype(jnp.float32)   # (C, Cr)
    w2t = jnp.transpose(w2).astype(jnp.float32)   # (Cr, C)
    cw = conv_w.reshape(-1).astype(jnp.float32)   # (18,): [max taps | avg taps]

    # Boundary + padding masks, constant per (H, W): built once in the wrapper
    # (no per-grid-step iota / integer div-mod on the VPU).
    idx = jnp.arange(HWp, dtype=jnp.int32)
    row = idx // W
    col = idx % W
    valid = idx < HW
    masks = jnp.stack([
        ((col >= 1) & valid).astype(jnp.float32),          # col j-1 in range
        ((col <= W - 2) & valid).astype(jnp.float32),      # col j+1 in range
        ((row >= 1) & valid).astype(jnp.float32),          # row i-1 in range
        ((row <= H - 2) & valid).astype(jnp.float32),      # row i+1 in range
        jnp.where(valid, 0.0, -1e30).astype(jnp.float32),  # max-pool pad killer
        jnp.zeros((HWp,), jnp.float32),
        jnp.zeros((HWp,), jnp.float32),
        jnp.zeros((HWp,), jnp.float32),
    ], axis=0)                                             # (8, HWp)

    itemsize = x.dtype.itemsize
    in_bytes_img = C * HWp * itemsize
    f32_bytes_img = C * HWp * 4

    try:
        phys_vmem = int(getattr(pltpu.get_tpu_info(), "vmem_capacity_bytes",
                                128 << 20))
    except Exception:
        phys_vmem = 128 << 20
    small_vmem = phys_vmem <= (64 << 20)           # v7x-class TensorCore
    vmem_limit = min(int(phys_vmem * 3 // 4), 96 << 20)

    TB = _pick_batch_tile(
        B, in_bytes_img, f32_bytes_img,
        vmem_budget=int(vmem_limit * 0.8),
        min_steps=4 if small_vmem else 2,
        max_block_bytes=(4 << 20) if small_vmem else (8 << 20))
    CK = _pick_channel_chunk(TB, C, HWp)
    grid = (B // TB,)

    bytes_accessed = int(2 * B * C * HWp * itemsize + 2 * C * Cr * 4
                         + (8 * HWp + 18) * 4)
    flops = int(B * (7 * C * HWp + 8 * C * Cr + 40 * HWp))
    transcendentals = int(B * (C + HWp))

    out_flat = pl.pallas_call(
        functools.partial(cbam_kernel, H=H, W=W, CK=CK, padded=padded),
        out_shape=jax.ShapeDtypeStruct((B, C, HWp), x.dtype),
        grid_spec=pltpu.PrefetchScalarGridSpec(
            num_scalar_prefetch=0,
            grid=grid,
            in_specs=[
                pl.BlockSpec((TB, C, HWp), lambda b: (b, 0, 0)),
                pl.BlockSpec((C, Cr), lambda b: (0, 0)),
                pl.BlockSpec((Cr, C), lambda b: (0, 0)),
                pl.BlockSpec((8, HWp), lambda b: (0, 0)),
                pl.BlockSpec(memory_space=pltpu.MemorySpace.SMEM),
            ],
            out_specs=pl.BlockSpec((TB, C, HWp), lambda b: (b, 0, 0)),
        ),
        compiler_params=pltpu.CompilerParams(
            dimension_semantics=("parallel",),
            vmem_limit_bytes=vmem_limit,
        ),
        cost_estimate=pl.CostEstimate(
            flops=flops,
            transcendentals=transcendentals,
            bytes_accessed=bytes_accessed,
        ),
    )(x_flat, w1t, w2t, masks, cw)

    out = out_flat[:, :, :HW] if padded else out_flat
    return out.reshape(B, C, H, W)


def cbam_reference(x, w1, w2, conv_w):
    """Pure-JAX reference with the same semantics as the PyTorch module."""
    mx = jnp.max(x, axis=(2, 3))                   # (B, C)
    av = jnp.mean(x, axis=(2, 3))                  # (B, C)

    def fc(v):
        h = jnp.maximum(jnp.dot(v, w1.T, precision=lax.Precision.HIGHEST), 0.0)
        return jnp.dot(h, w2.T, precision=lax.Precision.HIGHEST)

    ca = jax.nn.sigmoid(fc(av) + fc(mx))[:, :, None, None]
    y = ca * x

    s_max = jnp.max(y, axis=1, keepdims=True)      # (B, 1, H, W)
    s_avg = jnp.mean(y, axis=1, keepdims=True)     # (B, 1, H, W)
    pooled = jnp.concatenate([s_max, s_avg], axis=1)
    conv = lax.conv_general_dilated(
        pooled, conv_w, window_strides=(1, 1), padding=((1, 1), (1, 1)),
        dimension_numbers=("NCHW", "OIHW", "NCHW"),
        precision=lax.Precision.HIGHEST)
    sa = jax.nn.sigmoid(conv)                      # (B, 1, H, W)
    return sa * y


if __name__ == "__main__":
    def run_case(B, C, H, W, ratio):
        Cr = max(1, C // ratio)
        key = jax.random.PRNGKey(0)
        kx, k1, k2, k3 = jax.random.split(key, 4)
        x = jax.random.normal(kx, (B, C, H, W), dtype=jnp.float32)
        # deterministic synthetic parameters (nn.Linear / nn.Conv2d, bias-free)
        w1 = jax.random.normal(k1, (Cr, C), dtype=jnp.float32) * 0.2
        w2 = jax.random.normal(k2, (C, Cr), dtype=jnp.float32) * 0.2
        conv_w = jax.random.normal(k3, (1, 2, 3, 3), dtype=jnp.float32) * 0.2

        out = jax.block_until_ready(cbam_pallas(x, w1, w2, conv_w))
        ref = cbam_reference(x, w1, w2, conv_w)
        assert out.shape == (B, C, H, W)
        err = float(jnp.max(jnp.abs(out - ref)))
        assert jnp.allclose(out, ref, atol=1e-3, rtol=1e-3), (B, C, H, W, err)

    run_case(2, 32, 16, 16, 16)   # lane-aligned spatial dim (H*W = 256)
    run_case(2, 32, 14, 14, 16)   # padded spatial path (H*W = 196 -> 256 lanes)
    print("KERNEL_OK")
</pallas_src>

<mosaic_0001>
module attributes {stable_mosaic.version = 11 : i64} {
  func.func @cbam_kernel(%arg0: i32, %arg1: memref<1x32x256xf32, #tpu.memory_space<vmem>>, %arg2: memref<32x2xf32, #tpu.memory_space<vmem>>, %arg3: memref<2x32xf32, #tpu.memory_space<vmem>>, %arg4: memref<8x256xf32, #tpu.memory_space<vmem>>, %arg5: memref<18xf32, #tpu.memory_space<smem>>, %arg6: memref<1x32x256xf32, #tpu.memory_space<vmem>>) attributes {dimension_semantics = [#tpu.dimension_semantics<parallel>], iteration_bounds = array<i64: 2>, scalar_prefetch = 0 : i64, scratch_operands = 0 : i64, tpu.core_type = #tpu.core_type<tc>, window_params = [{transform_indices = @transform_0, window_bounds = array<i64: 1, 32, 256>}, {pipeline_mode = #tpu.pipeline_mode<synchronous>, transform_indices = @transform_1, window_bounds = array<i64: 32, 2>}, {pipeline_mode = #tpu.pipeline_mode<synchronous>, transform_indices = @transform_2, window_bounds = array<i64: 2, 32>}, {pipeline_mode = #tpu.pipeline_mode<synchronous>, transform_indices = @transform_3, window_bounds = array<i64: 8, 256>}, {transform_indices = @transform_4, window_bounds = array<i64: 18>}, {transform_indices = @transform_5, window_bounds = array<i64: 1, 32, 256>}]} {
    %c0 = arith.constant 0 : index
    %c0_0 = arith.constant 0 : index
    %0 = vector.load %arg4[%c0, %c0_0] : memref<8x256xf32, #tpu.memory_space<vmem>>, vector<8x256xf32>
    %1 = vector.extract_strided_slice %0 {offsets = [0, 0], sizes = [1, 256], strides = [1, 1]} : vector<8x256xf32> to vector<1x256xf32>
    %2 = vector.extract_strided_slice %0 {offsets = [1, 0], sizes = [1, 256], strides = [1, 1]} : vector<8x256xf32> to vector<1x256xf32>
    %3 = vector.extract_strided_slice %0 {offsets = [2, 0], sizes = [1, 256], strides = [1, 1]} : vector<8x256xf32> to vector<1x256xf32>
    %4 = vector.extract_strided_slice %0 {offsets = [3, 0], sizes = [1, 256], strides = [1, 1]} : vector<8x256xf32> to vector<1x256xf32>
    %c0_1 = arith.constant 0 : index
    %c0_2 = arith.constant 0 : index
    %c0_3 = arith.constant 0 : index
    %5 = vector.load %arg1[%c0_1, %c0_2, %c0_3] : memref<1x32x256xf32, #tpu.memory_space<vmem>>, vector<1x32x256xf32>
    %cst = arith.constant dense<0xFF800000> : vector<1x32xf32>
    %6 = vector.multi_reduction <maximumf>, %5, %cst [2] : vector<1x32x256xf32> to vector<1x32xf32>
    %cst_4 = arith.constant dense<0.000000e+00> : vector<1x32xf32>
    %7 = vector.multi_reduction <add>, %5, %cst_4 [2] : vector<1x32x256xf32> to vector<1x32xf32>
    %cst_5 = arith.constant 3.906250e-03 : f32
    %8 = vector.broadcast %cst_5 : f32 to vector<1x32xf32>
    %9 = arith.mulf %7, %8 : vector<1x32xf32>
    %10 = tpu.concatenate %9, %6 in 0 : vector<1x32xf32>, vector<1x32xf32> -> vector<2x32xf32>
    %c0_6 = arith.constant 0 : index
    %c0_7 = arith.constant 0 : index
    %11 = vector.load %arg2[%c0_6, %c0_7] : memref<32x2xf32, #tpu.memory_space<vmem>>, vector<32x2xf32>
    %cst_8 = arith.constant dense<0.000000e+00> : vector<2x2xf32>
    %12 = tpu.matmul %10, %11, %cst_8 {dimension_numbers = #tpu.dot_dimension_numbers<[1], [0], [0], [1], [0, 0, 1, 1], [], []>} : vector<2x32xf32>, vector<32x2xf32>, vector<2x2xf32> -> vector<2x2xf32>
    %cst_9 = arith.constant 0.000000e+00 : f32
    %13 = vector.broadcast %cst_9 : f32 to vector<2x2xf32>
    %14 = arith.maximumf %12, %13 : vector<2x2xf32>
    %c0_10 = arith.constant 0 : index
    %c0_11 = arith.constant 0 : index
    %15 = vector.load %arg3[%c0_10, %c0_11] : memref<2x32xf32, #tpu.memory_space<vmem>>, vector<2x32xf32>
    %cst_12 = arith.constant dense<0.000000e+00> : vector<2x32xf32>
    %16 = tpu.matmul %14, %15, %cst_12 {dimension_numbers = #tpu.dot_dimension_numbers<[1], [0], [0], [1], [0, 0, 1, 1], [], []>} : vector<2x2xf32>, vector<2x32xf32>, vector<2x32xf32> -> vector<2x32xf32>
    %17 = vector.extract_strided_slice %16 {offsets = [0, 0], sizes = [1, 32], strides = [1, 1]} : vector<2x32xf32> to vector<1x32xf32>
    %18 = vector.extract_strided_slice %16 {offsets = [1, 0], sizes = [1, 32], strides = [1, 1]} : vector<2x32xf32> to vector<1x32xf32>
    %19 = arith.addf %17, %18 : vector<1x32xf32>
    %20 = arith.negf %19 : vector<1x32xf32>
    %21 = math.exp %20 : vector<1x32xf32>
    %cst_13 = arith.constant 1.000000e+00 : f32
    %22 = vector.broadcast %cst_13 : f32 to vector<1x32xf32>
    %23 = arith.addf %22, %21 : vector<1x32xf32>
    %24 = arith.divf %22, %23 : vector<1x32xf32>
    %c0_14 = arith.constant 0 : index
    %c0_15 = arith.constant 0 : index
    %c0_16 = arith.constant 0 : index
    %25 = vector.load %arg1[%c0_14, %c0_15, %c0_16] : memref<1x32x256xf32, #tpu.memory_space<vmem>>, vector<1x32x256xf32>
    %26 = vector.shape_cast %24 : vector<1x32xf32> to vector<1x32x1xf32>
    %27 = vector.broadcast %26 : vector<1x32x1xf32> to vector<1x32x256xf32>
    %28 = arith.mulf %25, %27 : vector<1x32x256xf32>
    %cst_17 = arith.constant dense<0xFF800000> : vector<1x256xf32>
    %29 = vector.multi_reduction <maximumf>, %28, %cst_17 [1] : vector<1x32x256xf32> to vector<1x256xf32>
    %cst_18 = arith.constant dense<0.000000e+00> : vector<1x256xf32>
    %30 = vector.multi_reduction <add>, %28, %cst_18 [1] : vector<1x32x256xf32> to vector<1x256xf32>
    %cst_19 = arith.constant 3.125000e-02 : f32
    %31 = vector.broadcast %cst_19 : f32 to vector<1x256xf32>
    %32 = arith.mulf %30, %31 : vector<1x256xf32>
    %c1_i32 = arith.constant 1 : i32
    %33 = tpu.dynamic_rotate %29 by %c1_i32 dim 1 : vector<1x256xf32>, i32 -> vector<1x256xf32>
    %34 = arith.mulf %33, %1 : vector<1x256xf32>
    %c255_i32 = arith.constant 255 : i32
    %35 = tpu.dynamic_rotate %29 by %c255_i32 dim 1 : vector<1x256xf32>, i32 -> vector<1x256xf32>
    %36 = arith.mulf %35, %2 : vector<1x256xf32>
    %c1_i32_20 = arith.constant 1 : i32
    %37 = tpu.dynamic_rotate %32 by %c1_i32_20 dim 1 : vector<1x256xf32>, i32 -> vector<1x256xf32>
    %38 = arith.mulf %37, %1 : vector<1x256xf32>
    %c255_i32_21 = arith.constant 255 : i32
    %39 = tpu.dynamic_rotate %32 by %c255_i32_21 dim 1 : vector<1x256xf32>, i32 -> vector<1x256xf32>
    %40 = arith.mulf %39, %2 : vector<1x256xf32>
    %c3 = arith.constant 3 : index
    %41 = memref.load %arg5[%c3] : memref<18xf32, #tpu.memory_space<smem>>
    %42 = vector.broadcast %41 : f32 to vector<1x256xf32>
    %43 = arith.mulf %42, %34 : vector<1x256xf32>
    %c4 = arith.constant 4 : index
    %44 = memref.load %arg5[%c4] : memref<18xf32, #tpu.memory_space<smem>>
    %45 = vector.broadcast %44 : f32 to vector<1x256xf32>
    %46 = arith.mulf %45, %29 : vector<1x256xf32>
    %47 = arith.addf %43, %46 : vector<1x256xf32>
    %c5 = arith.constant 5 : index
    %48 = memref.load %arg5[%c5] : memref<18xf32, #tpu.memory_space<smem>>
    %49 = vector.broadcast %48 : f32 to vector<1x256xf32>
    %50 = arith.mulf %49, %36 : vector<1x256xf32>
    %51 = arith.addf %47, %50 : vector<1x256xf32>
    %c12 = arith.constant 12 : index
    %52 = memref.load %arg5[%c12] : memref<18xf32, #tpu.memory_space<smem>>
    %53 = vector.broadcast %52 : f32 to vector<1x256xf32>
    %54 = arith.mulf %53, %38 : vector<1x256xf32>
    %55 = arith.addf %51, %54 : vector<1x256xf32>
    %c13 = arith.constant 13 : index
    %56 = memref.load %arg5[%c13] : memref<18xf32, #tpu.memory_space<smem>>
    %57 = vector.broadcast %56 : f32 to vector<1x256xf32>
    %58 = arith.mulf %57, %32 : vector<1x256xf32>
    %59 = arith.addf %55, %58 : vector<1x256xf32>
    %c14 = arith.constant 14 : index
    %60 = memref.load %arg5[%c14] : memref<18xf32, #tpu.memory_space<smem>>
    %61 = vector.broadcast %60 : f32 to vector<1x256xf32>
    %62 = arith.mulf %61, %40 : vector<1x256xf32>
    %63 = arith.addf %59, %62 : vector<1x256xf32>
    %c0_22 = arith.constant 0 : index
    %64 = memref.load %arg5[%c0_22] : memref<18xf32, #tpu.memory_space<smem>>
    %65 = vector.broadcast %64 : f32 to vector<1x256xf32>
    %66 = arith.mulf %65, %34 : vector<1x256xf32>
    %c1 = arith.constant 1 : index
    %67 = memref.load %arg5[%c1] : memref<18xf32, #tpu.memory_space<smem>>
    %68 = vector.broadcast %67 : f32 to vector<1x256xf32>
    %69 = arith.mulf %68, %29 : vector<1x256xf32>
    %70 = arith.addf %66, %69 : vector<1x256xf32>
    %c2 = arith.constant 2 : index
    %71 = memref.load %arg5[%c2] : memref<18xf32, #tpu.memory_space<smem>>
    %72 = vector.broadcast %71 : f32 to vector<1x256xf32>
    %73 = arith.mulf %72, %36 : vector<1x256xf32>
    %74 = arith.addf %70, %73 : vector<1x256xf32>
    %c9 = arith.constant 9 : index
    %75 = memref.load %arg5[%c9] : memref<18xf32, #tpu.memory_space<smem>>
    %76 = vector.broadcast %75 : f32 to vector<1x256xf32>
    %77 = arith.mulf %76, %38 : vector<1x256xf32>
    %78 = arith.addf %74, %77 : vector<1x256xf32>
    %c10 = arith.constant 10 : index
    %79 = memref.load %arg5[%c10] : memref<18xf32, #tpu.memory_space<smem>>
    %80 = vector.broadcast %79 : f32 to vector<1x256xf32>
    %81 = arith.mulf %80, %32 : vector<1x256xf32>
    %82 = arith.addf %78, %81 : vector<1x256xf32>
    %c11 = arith.constant 11 : index
    %83 = memref.load %arg5[%c11] : memref<18xf32, #tpu.memory_space<smem>>
    %84 = vector.broadcast %83 : f32 to vector<1x256xf32>
    %85 = arith.mulf %84, %40 : vector<1x256xf32>
    %86 = arith.addf %82, %85 : vector<1x256xf32>
    %c16_i32 = arith.constant 16 : i32
    %87 = tpu.dynamic_rotate %86 by %c16_i32 dim 1 : vector<1x256xf32>, i32 -> vector<1x256xf32>
    %88 = arith.mulf %87, %3 : vector<1x256xf32>
    %89 = arith.addf %63, %88 : vector<1x256xf32>
    %c6 = arith.constant 6 : index
    %90 = memref.load %arg5[%c6] : memref<18xf32, #tpu.memory_space<smem>>
    %91 = vector.broadcast %90 : f32 to vector<1x256xf32>
    %92 = arith.mulf %91, %34 : vector<1x256xf32>
    %c7 = arith.constant 7 : index
    %93 = memref.load %arg5[%c7] : memref<18xf32, #tpu.memory_space<smem>>
    %94 = vector.broadcast %93 : f32 to vector<1x256xf32>
    %95 = arith.mulf %94, %29 : vector<1x256xf32>
    %96 = arith.addf %92, %95 : vector<1x256xf32>
    %c8 = arith.constant 8 : index
    %97 = memref.load %arg5[%c8] : memref<18xf32, #tpu.memory_space<smem>>
    %98 = vector.broadcast %97 : f32 to vector<1x256xf32>
    %99 = arith.mulf %98, %36 : vector<1x256xf32>
    %100 = arith.addf %96, %99 : vector<1x256xf32>
    %c15 = arith.constant 15 : index
    %101 = memref.load %arg5[%c15] : memref<18xf32, #tpu.memory_space<smem>>
    %102 = vector.broadcast %101 : f32 to vector<1x256xf32>
    %103 = arith.mulf %102, %38 : vector<1x256xf32>
    %104 = arith.addf %100, %103 : vector<1x256xf32>
    %c16 = arith.constant 16 : index
    %105 = memref.load %arg5[%c16] : memref<18xf32, #tpu.memory_space<smem>>
    %106 = vector.broadcast %105 : f32 to vector<1x256xf32>
    %107 = arith.mulf %106, %32 : vector<1x256xf32>
    %108 = arith.addf %104, %107 : vector<1x256xf32>
    %c17 = arith.constant 17 : index
    %109 = memref.load %arg5[%c17] : memref<18xf32, #tpu.memory_space<smem>>
    %110 = vector.broadcast %109 : f32 to vector<1x256xf32>
    %111 = arith.mulf %110, %40 : vector<1x256xf32>
    %112 = arith.addf %108, %111 : vector<1x256xf32>
    %c240_i32 = arith.constant 240 : i32
    %113 = tpu.dynamic_rotate %112 by %c240_i32 dim 1 : vector<1x256xf32>, i32 -> vector<1x256xf32>
    %114 = arith.mulf %113, %4 : vector<1x256xf32>
    %115 = arith.addf %89, %114 : vector<1x256xf32>
    %116 = arith.negf %115 : vector<1x256xf32>
    %117 = math.exp %116 : vector<1x256xf32>
    %cst_23 = arith.constant 1.000000e+00 : f32
    %118 = vector.broadcast %cst_23 : f32 to vector<1x256xf32>
    %119 = arith.addf %118, %117 : vector<1x256xf32>
    %120 = arith.divf %118, %119 : vector<1x256xf32>
    %c0_24 = arith.constant 0 : index
    %c0_25 = arith.constant 0 : index
    %c0_26 = arith.constant 0 : index
    %121 = vector.load %arg1[%c0_24, %c0_25, %c0_26] : memref<1x32x256xf32, #tpu.memory_space<vmem>>, vector<1x32x256xf32>
    %122 = vector.shape_cast %24 : vector<1x32xf32> to vector<1x32x1xf32>
    %123 = vector.broadcast %122 : vector<1x32x1xf32> to vector<1x32x256xf32>
    %124 = arith.mulf %121, %123 : vector<1x32x256xf32>
    %125 = vector.shape_cast %120 : vector<1x256xf32> to vector<1x1x256xf32>
    %126 = vector.broadcast %125 : vector<1x1x256xf32> to vector<1x32x256xf32>
    %127 = arith.mulf %124, %126 : vector<1x32x256xf32>
    %c0_27 = arith.constant 0 : index
    %c0_28 = arith.constant 0 : index
    %c0_29 = arith.constant 0 : index
    %128 = vector.load %arg6[%c0_27, %c0_28, %c0_29] : memref<1x32x256xf32, #tpu.memory_space<vmem>>, vector<1x32x256xf32>
    tpu.vector_store %arg6[%c0_27, %c0_28, %c0_29], %127 {strides = array<i32>} : memref<1x32x256xf32, #tpu.memory_space<vmem>>, vector<1x32x256xf32>,
    return
  }
  func.func @transform_0(%arg0: i32) -> (i32, i32, i32) {
    %c0_i32 = arith.constant 0 : i32
    %c0_i32_0 = arith.constant 0 : i32
    %c0_i32_1 = arith.constant 0 : i32
    return %arg0, %c0_i32, %c0_i32_0 : i32, i32, i32
  }
  func.func @transform_1(%arg0: i32) -> (i32, i32) {
    %c0_i32 = arith.constant 0 : i32
    %c0_i32_0 = arith.constant 0 : i32
    %c0_i32_1 = arith.constant 0 : i32
    return %c0_i32, %c0_i32_0 : i32, i32
  }
  func.func @transform_2(%arg0: i32) -> (i32, i32) {
    %c0_i32 = arith.constant 0 : i32
    %c0_i32_0 = arith.constant 0 : i32
    %c0_i32_1 = arith.constant 0 : i32
    return %c0_i32, %c0_i32_0 : i32, i32
  }
  func.func @transform_3(%arg0: i32) -> (i32, i32) {
    %c0_i32 = arith.constant 0 : i32
    %c0_i32_0 = arith.constant 0 : i32
    %c0_i32_1 = arith.constant 0 : i32
    return %c0_i32, %c0_i32_0 : i32, i32
  }
  func.func @transform_4(%arg0: i32) -> i32 {
    %c0_i32 = arith.constant 0 : i32
    %c0_i32_0 = arith.constant 0 : i32
    return %c0_i32 : i32
  }
  func.func @transform_5(%arg0: i32) -> (i32, i32, i32) {
    %c0_i32 = arith.constant 0 : i32
    %c0_i32_0 = arith.constant 0 : i32
    %c0_i32_1 = arith.constant 0 : i32
    return %arg0, %c0_i32, %c0_i32_0 : i32, i32, i32
  }
}

</mosaic_0001>

<llo_original>
// kernel: tpu_custom_call.1
$region0: #{tpu_custom_call.1}
  #allocation0 [shape = 'u32[]', space=smem, size = 0x4, offset = 0x4, fixed_abs, tag = 'smem constant byte address 0x4 - core index']
  #allocation1 [shape = 'u32[144,128]{1,0:T(1,128)}', space=vmem, size = 0x12000, scoped, tag = 'internal scratch']
  %s0 = inlined_call_operand.hbm [shape: f32[2,32,256], index: 0, kind: input, shape index: {}]
  %s1 = inlined_call_operand.vmem [shape: f32[32,2], index: 1, kind: input, shape index: {}]
  %s2 = inlined_call_operand.vmem [shape: f32[2,32], index: 2, kind: input, shape index: {}]
  %s3 = inlined_call_operand.vmem [shape: f32[8,256], index: 3, kind: input, shape index: {}]
  %s4 = inlined_call_operand.vmem [shape: f32[18], index: 4, kind: input, shape index: {}]
  %s5 = inlined_call_operand.hbm [shape: f32[2,32,256], index: 5, kind: output, shape index: {}]
  %s6 = sld [smem:[#allocation0]]
  $region61: #{tpu_custom_call.1} parent=0
    _
  %s8 = ssub.s32 1, %s6
  %s9 = scalar_select 0, %s8, %s6
  $region1: #{tpu_custom_call.1} parent=0
    #allocation2 [shape = 'u8[65536]{0}', space=vmem, size = 0x10000, scoped, tag = 'input window, operand 0']
    #allocation3 [shape = 's32[2]{0}', space=sflag, size = 0x8, scoped, tag = 'scoped memory for tpu_custom_call.1']
    #allocation4 [shape = 's32[2]{0}', space=sflag, size = 0x8, scoped, tag = 'scoped memory for tpu_custom_call.1']
    #allocation5 [shape = 's32[2]{0}', space=sflag, size = 0x8, scoped, tag = 'scoped memory for tpu_custom_call.1']
    #allocation6 [shape = 'u8[512]{0}', space=smem, size = 0x200, scoped, tag = 'input window, operand 4, single buffered']
    #allocation7 [shape = 'u8[65536]{0}', space=vmem, size = 0x10000, scoped, tag = 'output window, operand 0']
    %10 = vsyncpa [#allocation3], 0
    %s11 = scalar_lea.sflag [#allocation3], 1
    %12 = vsyncpa %s11, 0
    %13 = vsyncpa [#allocation5], 0
    %14 = vsyncpa [#allocation4], 0
    %s15 = scalar_lea.sflag [#allocation4], 1
    %16 = vsyncpa %s15, 0
    loop: start=0, step=1, limit=4
    $region2: #{tpu_custom_call.1} parent=1 // loop_pre_header
      _
    $region3: #{tpu_custom_call.1} parent=1 // loop_header
      %s18 = sphi 0, %s22
      %p19 = scmp.ge.s32.totalorder %s18, 4
      %s28 = sphi 0, %s30
      %s31 = sphi 0, %s28
      %s32 = sphi 0, %s31
      %s48 = sphi 0, %s32
      %s52 = sphi 0, %s52
      %s54 = sphi 0, %s52
      %s55 = sphi 0, %s54
      %s69 = sphi 0, %s55
      %s73 = sphi 0, %s73
      %s75 = sphi 0, %s73
      %s76 = sphi 0, %s75
      %s90 = sphi 0, %s76
      %s94 = sphi 0, %s94
      %s96 = sphi 0, %s94
      %s97 = sphi 0, %s96
      %s111 = sphi 0, %s97
      %s115 = sphi 0, %s115
      %s117 = sphi 0, %s115
      %s118 = sphi 0, %s117
      %s132 = sphi 0, %s118
      %s138 = sphi 0, %s140
      %s141 = sphi 0, %s138
      %s142 = sphi 0, %s141
      %s158 = sphi 0, %s142
    $region4: #{tpu_custom_call.1} parent=1 // loop_header_branch
      %21 = sbr.rel (%p19) target = $region8
    $region5: #{tpu_custom_call.1} parent=1 // loop_body
      %s23 = ssub.s32 %s18, 1
      %s24 = ssub.s32 %s18, 2
      %s25 = sadd.s32 %s18, 1
      %s26 = ssub.s32 %s18, %s25
      %p27 = scmp.eq.s32.totalorder %s26, 0
      %s29 = sadd.s32 %s28, 1
      %s30 = scalar_select %p27, %s28, %s29
      %p33 = pneg %p27
      %p34 = scmp.eq.s32.totalorder %s18, 1
      %p35 = por %p33, %p34
      %p36 = scmp.ne.s32.totalorder %s28, %s31
      %p37 = scmp.eq.s32.totalorder %s18, 0
      %p38 = por %p36, %p37
      %p39 = scmp.ne.s32.totalorder %s28, %s31
      %p40 = scmp.eq.s32.totalorder %s23, 1
      %p41 = por %p39, %p40
      %p42 = scmp.ne.s32.totalorder %s31, %s32
      %p43 = scmp.eq.s32.totalorder %s23, 0
      %p44 = por %p42, %p43
      %p45 = scmp.ne.s32.totalorder %s31, %s32
      %p46 = scmp.eq.s32.totalorder %s24, 1
      %p47 = por %p45, %p46
      %p49 = scmp.ne.s32.totalorder %s32, %s48
      %p50 = scmp.eq.s32.totalorder %s24, 0
      %p51 = por %p49, %p50
      %s53 = sadd.s32 %s52, 1
      %p56 = scmp.eq.s32.totalorder %s18, 1
      %p57 = scmp.ne.s32.totalorder %s52, %s54
      %p58 = scmp.eq.s32.totalorder %s18, 0
      %p59 = por %p57, %p58
      %p60 = scmp.ne.s32.totalorder %s52, %s54
      %p61 = scmp.eq.s32.totalorder %s23, 1
      %p62 = por %p60, %p61
      %p63 = scmp.ne.s32.totalorder %s54, %s55
      %p64 = scmp.eq.s32.totalorder %s23, 0
      %p65 = por %p63, %p64
      %p66 = scmp.ne.s32.totalorder %s54, %s55
      %p67 = scmp.eq.s32.totalorder %s24, 1
      %p68 = por %p66, %p67
      %p70 = scmp.ne.s32.totalorder %s55, %s69
      %p71 = scmp.eq.s32.totalorder %s24, 0
      %p72 = por %p70, %p71
      %s74 = sadd.s32 %s73, 1
      %p77 = scmp.eq.s32.totalorder %s18, 1
      %p78 = scmp.ne.s32.totalorder %s73, %s75
      %p79 = scmp.eq.s32.totalorder %s18, 0
      %p80 = por %p78, %p79
      %p81 = scmp.ne.s32.totalorder %s73, %s75
      %p82 = scmp.eq.s32.totalorder %s23, 1
      %p83 = por %p81, %p82
      %p84 = scmp.ne.s32.totalorder %s75, %s76
      %p85 = scmp.eq.s32.totalorder %s23, 0
      %p86 = por %p84, %p85
      %p87 = scmp.ne.s32.totalorder %s75, %s76
      %p88 = scmp.eq.s32.totalorder %s24, 1
      %p89 = por %p87, %p88
      %p91 = scmp.ne.s32.totalorder %s76, %s90
      %p92 = scmp.eq.s32.totalorder %s24, 0
      %p93 = por %p91, %p92
      %s95 = sadd.s32 %s94, 1
      %p98 = scmp.eq.s32.totalorder %s18, 1
      %p99 = scmp.ne.s32.totalorder %s94, %s96
      %p100 = scmp.eq.s32.totalorder %s18, 0
      %p101 = por %p99, %p100
      %p102 = scmp.ne.s32.totalorder %s94, %s96
      %p103 = scmp.eq.s32.totalorder %s23, 1
      %p104 = por %p102, %p103
      %p105 = scmp.ne.s32.totalorder %s96, %s97
      %p106 = scmp.eq.s32.totalorder %s23, 0
      %p107 = por %p105, %p106
      %p108 = scmp.ne.s32.totalorder %s96, %s97
      %p109 = scmp.eq.s32.totalorder %s24, 1
      %p110 = por %p108, %p109
      %p112 = scmp.ne.s32.totalorder %s97, %s111
      %p113 = scmp.eq.s32.totalorder %s24, 0
      %p114 = por %p112, %p113
      %s116 = sadd.s32 %s115, 1
      %p119 = scmp.eq.s32.totalorder %s18, 1
      %p120 = scmp.ne.s32.totalorder %s115, %s117
      %p121 = scmp.eq.s32.totalorder %s18, 0
      %p122 = por %p120, %p121
      %p123 = scmp.ne.s32.totalorder %s115, %s117
      %p124 = scmp.eq.s32.totalorder %s23, 1
      %p125 = por %p123, %p124
      %p126 = scmp.ne.s32.totalorder %s117, %s118
      %p127 = scmp.eq.s32.totalorder %s23, 0
      %p128 = por %p126, %p127
      %p129 = scmp.ne.s32.totalorder %s117, %s118
      %p130 = scmp.eq.s32.totalorder %s24, 1
      %p131 = por %p129, %p130
      %p133 = scmp.ne.s32.totalorder %s118, %s132
      %p134 = scmp.eq.s32.totalorder %s24, 0
      %p135 = por %p133, %p134
      %s136 = ssub.s32 %s18, %s25
      %p137 = scmp.eq.s32.totalorder %s136, 0
      %s139 = sadd.s32 %s138, 1
      %s140 = scalar_select %p137, %s138, %s139
      %p143 = pneg %p137
      %p144 = scmp.eq.s32.totalorder %s18, 1
      %p145 = por %p143, %p144
      %p146 = scmp.ne.s32.totalorder %s138, %s141
      %p147 = scmp.eq.s32.totalorder %s18, 0
      %p148 = por %p146, %p147
      %p149 = scmp.ne.s32.totalorder %s138, %s141
      %p150 = scmp.eq.s32.totalorder %s23, 1
      %p151 = por %p149, %p150
      %p152 = scmp.ne.s32.totalorder %s141, %s142
      %p153 = scmp.eq.s32.totalorder %s23, 0
      %p154 = por %p152, %p153
      %p155 = scmp.ne.s32.totalorder %s141, %s142
      %p156 = scmp.eq.s32.totalorder %s24, 1
      %p157 = por %p155, %p156
      %p159 = scmp.ne.s32.totalorder %s142, %s158
      %p160 = scmp.eq.s32.totalorder %s24, 0
      %p161 = por %p159, %p160
      %p162 = scmp.le.s32.totalorder 1, %s18
      %p163 = scmp.lt.s32.totalorder %s18, 3
      %p164 = pnand %p162, %p163
      %p165 = pneg %p164
      // Predicated region
      $region9: #{tpu_custom_call.1} parent=5 // pred_check
        _
      $region10: #{tpu_custom_call.1} parent=5 // pred_check_branch
        %167 = sbr.rel (%p164) target = $region12
      $region11: #{tpu_custom_call.1} parent=5 // pred_region
        %s168 = ssub.s32 %s18, 1
        // Predicated region
        $region13: #{tpu_custom_call.1} parent=11 // pred_check
          %p169 = pneg %p65
        $region14: #{tpu_custom_call.1} parent=11 // pred_check_branch
          %171 = sbr.rel (%p169) target = $region16
        $region15: #{tpu_custom_call.1} parent=11 // pred_region
          _
        $region16: #{tpu_custom_call.1} parent=11 // pred_fallthru
          _
        // Predicated region
        $region17: #{tpu_custom_call.1} parent=11 // pred_check
          %p172 = pneg %p86
        $region18: #{tpu_custom_call.1} parent=11 // pred_check_branch
          %174 = sbr.rel (%p172) target = $region20
        $region19: #{tpu_custom_call.1} parent=11 // pred_region
          _
        $region20: #{tpu_custom_call.1} parent=11 // pred_fallthru
          _
        // Predicated region
        $region21: #{tpu_custom_call.1} parent=11 // pred_check
          %p175 = pneg %p107
        $region22: #{tpu_custom_call.1} parent=11 // pred_check_branch
          %177 = sbr.rel (%p175) target = $region24
        $region23: #{tpu_custom_call.1} parent=11 // pred_region
          _
        $region24: #{tpu_custom_call.1} parent=11 // pred_fallthru
          _
        // Predicated region
        $region25: #{tpu_custom_call.1} parent=11 // pred_check
          %p178 = pneg %p128
        $region26: #{tpu_custom_call.1} parent=11 // pred_check_branch
          %180 = sbr.rel (%p178) target = $region28
        $region27: #{tpu_custom_call.1} parent=11 // pred_region
          %s182 = ssub.s32 16, 16
          %183 = vsyncadd [#allocation5], %s182
          %s185 = sshll.u32 %s4, 4
          %s186 = int_to_ptr.vmem [resolvable:$true] %s185
          %188 = dma.vmem_to_smem %s186, 16, [#allocation6], [#allocation5]
        $region28: #{tpu_custom_call.1} parent=11 // pred_fallthru
          _
      $region12: #{tpu_custom_call.1} parent=5 // pred_fallthru
        _
      %p189 = scmp.lt.s32.totalorder %s18, 2
      // Predicated region
      $region29: #{tpu_custom_call.1} parent=5 // pred_check
        %p190 = pneg %p189
      $region30: #{tpu_custom_call.1} parent=5 // pred_check_branch
        %192 = sbr.rel (%p190) target = $region32
      $region31: #{tpu_custom_call.1} parent=5 // pred_region
        // Predicated region
        $region33: #{tpu_custom_call.1} parent=31 // pred_check
          %p193 = pneg %p38
        $region34: #{tpu_custom_call.1} parent=31 // pred_check_branch
          %195 = sbr.rel (%p193) target = $region36
        $region35: #{tpu_custom_call.1} parent=31 // pred_region
          %s196 = sand.u32 %s28, 1
          %s197 = scalar_lea.sflag [#allocation3], %s196
          %s198 = sand.u32 %s28, 1
          %s199 = smul.addr %s198, 64
          %s200 = scalar_lea.vmem [#allocation2], %s199
          %s202 = ssub.s32 1024, 1024
          %203 = vsyncadd %s197, %s202
          %s204 = smul.addr %s18, 8
          %s205 = smul.addr %s204, 128
          %s206 = scalar_lea.hbm %s0, %s205
          %s207 = sshll.u32 %s200, 4
          %s208 = int_to_ptr.vmem [resolvable:$true] %s207
          %213 = dma.hbm_to_vmem [thread:$0]  %s206, 1024, %s208, %s197, 256, 256, 16
        $region36: #{tpu_custom_call.1} parent=31 // pred_fallthru
          _
      $region32: #{tpu_custom_call.1} parent=5 // pred_fallthru
        _
      %p214 = scmp.le.s32.totalorder 1, %s18
      %p215 = scmp.lt.s32.totalorder %s18, 3
      %p216 = pnand %p214, %p215
      %p217 = pneg %p216
      // Predicated region
      $region37: #{tpu_custom_call.1} parent=5 // pred_check
        _
      $region38: #{tpu_custom_call.1} parent=5 // pred_check_branch
        %219 = sbr.rel (%p216) target = $region40
      $region39: #{tpu_custom_call.1} parent=5 // pred_region
        %s220 = ssub.s32 %s18, 1
        %s221 = sand.u32 %s31, 1
        %s222 = scalar_lea.sflag [#allocation3], %s221
        %s223 = sand.u32 %s31, 1
        %s224 = smul.addr %s223, 64
        %s225 = scalar_lea.vmem [#allocation2], %s224
        // Predicated region
        $region41: #{tpu_custom_call.1} parent=39 // pred_check
          %p226 = pneg %p44
        $region42: #{tpu_custom_call.1} parent=39 // pred_check_branch
          %228 = sbr.rel (%p226) target = $region44
        $region43: #{tpu_custom_call.1} parent=39 // pred_region
          %229 = dma.done %s222, 1024
        $region44: #{tpu_custom_call.1} parent=39 // pred_fallthru
          _
        // Predicated region
        $region45: #{tpu_custom_call.1} parent=39 // pred_check
          %p230 = pneg %p128
        $region46: #{tpu_custom_call.1} parent=39 // pred_check_branch
          %232 = sbr.rel (%p230) target = $region48
        $region47: #{tpu_custom_call.1} parent=39 // pred_region
          %233 = dma.done [#allocation5], 16
        $region48: #{tpu_custom_call.1} parent=39 // pred_fallthru
          _
        %234 = sfence
        %s235 = sand.u32 %s31, 1
        %s236 = scalar_lea.sflag [#allocation3], %s235
        %s237 = sand.u32 %s31, 1
        %s238 = smul.addr %s237, 64
        %s239 = scalar_lea.vmem [#allocation2], %s238
        %p240 = pneg %p44
        %p241 = pneg %p41
        %p242 = pneg %p65
        %p243 = pneg %p62
        %p244 = pneg %p86
        %p245 = pneg %p83
        %p246 = pneg %p107
        %p247 = pneg %p104
        %p248 = pneg %p128
        %p249 = pneg %p125
        %p250 = pneg %p154
        %p251 = pneg %p151
        %s252 = sand.u32 %s141, 1
        %s253 = scalar_lea.sflag [#allocation4], %s252
        %s254 = sand.u32 %s141, 1
        %s255 = smul.addr %s254, 64
        %s256 = scalar_lea.vmem [#allocation7], %s255
        %v257 = vld [vmem:[%s3] sm:$0xff]
        %v258 = vld [vmem:[%s3 + $0x8] sm:$0xff]
        %v259 = vld [vmem:[%s225] sm:$0xff]
        %v260 = vld [vmem:[%s225 + $0x8] sm:$0xff]
        %v261 = vld [vmem:[%s225 + $0x10] sm:$0xff]
        %v262 = vld [vmem:[%s225 + $0x18] sm:$0xff]
        %v263 = vld [vmem:[%s225 + $0x20] sm:$0xff]
        %v264 = vld [vmem:[%s225 + $0x28] sm:$0xff]
        %v265 = vld [vmem:[%s225 + $0x30] sm:$0xff]
        %v266 = vld [vmem:[%s225 + $0x38] sm:$0xff]
        %v267 = vmax.f32 %v259, %v260
        %268 = vmax.xlane.f32.xlu0 %v267
        %v269 = vpop.xlane.xlu0 %268
        %v270 = vmax.f32 %v261, %v262
        %271 = vmax.xlane.f32.xlu0 %v270
        %v272 = vpop.xlane.xlu0 %271
        %v273 = vmax.f32 %v263, %v264
        %274 = vmax.xlane.f32.xlu0 %v273
        %v275 = vpop.xlane.xlu0 %274
        %v276 = vmax.f32 %v265, %v266
        %277 = vmax.xlane.f32.xlu0 %v276
        %v278 = vpop.xlane.xlu0 %277
        %v279 = vadd.f32 %v259, %v260
        %280 = vadd.xlane.f32.xlu0 %v279
        %v281 = vpop.xlane.xlu0 %280
        %v282 = vadd.f32 %v261, %v262
        %283 = vadd.xlane.f32.xlu0 %v282
        %v284 = vpop.xlane.xlu0 %283
        %v285 = vadd.f32 %v263, %v264
        %286 = vadd.xlane.f32.xlu0 %v285
        %v287 = vpop.xlane.xlu0 %286
        %v288 = vadd.f32 %v265, %v266
        %289 = vadd.xlane.f32.xlu0 %v288
        %v290 = vpop.xlane.xlu0 %289
        %v291 = vmul.f32 %v281, 0.00390625
        %v292 = vmul.f32 %v284, 0.00390625
        %v293 = vmul.f32 %v287, 0.00390625
        %v294 = vmul.f32 %v290, 0.00390625
        %v299 = vlaneseq
        %v300 = vand.u32 %v299, 127
        %v301 = vlaneseq
        %v302 = vshrl.u32 %v301, 7
        %v303 = vsub.s32 %v300, %v302
        %v304 = vrot.slane %v291, %v303
        %v305 = vadd.s32 %v300, 4294967288
        %v306 = vlaneseq
        %v307 = vshrl.u32 %v306, 7
        %v308 = vsub.s32 %v305, %v307
        %v309 = vrot.slane %v292, %v308
        %vm310 = vcmask 130112
        %v311 = vsel %vm310, %v309, %v304
        %v312 = vadd.s32 %v300, 4294967280
        %v313 = vlaneseq
        %v314 = vshrl.u32 %v313, 7
        %v315 = vsub.s32 %v312, %v314
        %v316 = vrot.slane %v293, %v315
        %vm317 = vcmask 195712
        %v318 = vsel %vm317, %v316, %v311
        %v319 = vadd.s32 %v300, 4294967272
        %v320 = vlaneseq
        %v321 = vshrl.u32 %v320, 7
        %v322 = vsub.s32 %v319, %v321
        %v323 = vrot.slane %v294, %v322
        %vm324 = vcmask 261312
        %v325 = vsel %vm324, %v323, %v318
        %v331 = vlaneseq
        %v332 = vshrl.u32 %v331, 7
        %v333 = vsub.s32 %v300, %v332
        %v334 = vrot.slane %v269, %v333
        %v335 = vlaneseq
        %v336 = vshrl.u32 %v335, 7
        %v337 = vsub.s32 %v305, %v336
        %v338 = vrot.slane %v272, %v337
        %v339 = vsel %vm310, %v338, %v334
        %v340 = vlaneseq
        %v341 = vshrl.u32 %v340, 7
        %v342 = vsub.s32 %v312, %v341
        %v343 = vrot.slane %v275, %v342
        %v344 = vsel %vm317, %v343, %v339
        %v345 = vlaneseq
        %v346 = vshrl.u32 %v345, 7
        %v347 = vsub.s32 %v319, %v346
        %v348 = vrot.slane %v278, %v347
        %v349 = vsel %vm324, %v348, %v344
        %vm351 = vcmask 1040384
        %v352 = vsel %vm351, %v325, %v349
        %v353 = vld [vmem:[%s1] sm:$0xff]
        %v354 = vld [vmem:[%s1 + $0x8] sm:$0xff]
        %v355 = vld [vmem:[%s1 + $0x10] sm:$0xff]
        %v356 = vld [vmem:[%s1 + $0x18] sm:$0xff]
        %vm357 = vcmask 261120
        %v359 = vsel %vm357, %v352, 0
        %361 = vmatprep.subr.mxu0 0.0
        %362 = vmatpush1.msra.mxu0 0.0
        %363 = vmatprep.subr.mxu0 0.0
        %364 = vmatpush1.msra.mxu0 0.0
        %365 = vmatprep.subr.mxu0 0.0
        %366 = vmatpush1.msra.mxu0 0.0
        %367 = vmatprep.subr.mxu0 0.0
        %368 = vmatpush1.msra.mxu0 0.0
        %369 = vmatprep.subr.mxu0 0.0
        %370 = vmatpush1.msra.mxu0 0.0
        %371 = vmatprep.subr.mxu0 0.0
        %372 = vmatpush1.msra.mxu0 0.0
        %373 = vmatprep.subr.mxu0 0.0
        %374 = vmatpush1.msra.mxu0 0.0
        %375 = vmatprep.subr.mxu0 0.0
        %376 = vmatpush1.msra.mxu0 0.0
        %377 = vmatprep.subr.mxu0 0.0
        %378 = vmatpush1.msra.mxu0 0.0
        %379 = vmatprep.subr.mxu0 0.0
        %380 = vmatpush1.msra.mxu0 0.0
        %381 = vmatprep.subr.mxu0 0.0
        %382 = vmatpush1.msra.mxu0 0.0
        %383 = vmatprep.subr.mxu0 0.0
        %384 = vmatpush1.msra.mxu0 0.0
        %385 = vmatprep.subr.mxu0 0.0
        %386 = vmatpush1.msra.mxu0 %v356
        %387 = vmatprep.subr.mxu0 0.0
        %388 = vmatpush1.msra.mxu0 %v355
        %389 = vmatprep.subr.mxu0 0.0
        %390 = vmatpush1.msra.mxu0 %v354
        %391 = vmatprep.subr.mxu0 0.0
        %392 = vmatpush1.msra.mxu0 %v353
        %393 = vmatprep.subr.mxu0 0.0
        %394 = vmatpush2.msra.mxu0 0.0
        %395 = vmatprep.subr.mxu0 0.0
        %396 = vmatpush2.msra.mxu0 0.0
        %397 = vmatprep.subr.mxu0 0.0
        %398 = vmatpush2.msra.mxu0 0.0
        %399 = vmatprep.subr.mxu0 0.0
        %400 = vmatpush2.msra.mxu0 0.0
        %401 = vmatprep.subr.mxu0 0.0
        %402 = vmatpush2.msra.mxu0 0.0
        %403 = vmatprep.subr.mxu0 0.0
        %404 = vmatpush2.msra.mxu0 0.0
        %405 = vmatprep.subr.mxu0 0.0
        %406 = vmatpush2.msra.mxu0 0.0
        %407 = vmatprep.subr.mxu0 0.0
        %408 = vmatpush2.msra.mxu0 0.0
        %409 = vmatprep.subr.mxu0 0.0
        %410 = vmatpush2.msra.mxu0 0.0
        %411 = vmatprep.subr.mxu0 0.0
        %412 = vmatpush2.msra.mxu0 0.0
        %413 = vmatprep.subr.mxu0 0.0
        %414 = vmatpush2.msra.mxu0 0.0
        %415 = vmatprep.subr.mxu0 0.0
        %416 = vmatpush2.msra.mxu0 0.0
        %417 = vmatprep.subr.mxu0 0.0
        %418 = vmatpush2.msra.mxu0 0.0
        %419 = vmatprep.subr.mxu0 0.0
        %420 = vmatpush2.msra.mxu0 0.0
        %421 = vmatprep.subr.mxu0 0.0
        %422 = vmatpush2.msra.mxu0 0.0
        %423 = vmatprep.subr.mxu0 0.0
        %424 = vmatpush2.msra.mxu0 0.0
        %425 = vmatprep.mubr.f32.mxu0 0.0
        %426 = vmatmul.mubr.f32.gmra.mxu0 %v359
        %v427 = vpop.f32.mrf.mxu0
        %v428 = vadd.f32 0.0, %v427
        %v429 = vpop.f32.mrf.mxu0
        %430 = vdwg.mxu0
        %v431 = vmax.f32 %v428, 0.0
        %v432 = vld [vmem:[%s2] sm:$0x3]
        %vm433 = vcmask 15360
        %v435 = vsel %vm433, %v431, 0
        %vm437 = vcmask 1041408
        %v439 = vsel %vm437, %v432, 0
        %441 = vmatprep.subr.mxu0 0.0
        %442 = vmatpush1.msra.mxu0 0.0
        %443 = vmatprep.subr.mxu0 0.0
        %444 = vmatpush1.msra.mxu0 0.0
        %445 = vmatprep.subr.mxu0 0.0
        %446 = vmatpush1.msra.mxu0 0.0
        %447 = vmatprep.subr.mxu0 0.0
        %448 = vmatpush1.msra.mxu0 0.0
        %449 = vmatprep.subr.mxu0 0.0
        %450 = vmatpush1.msra.mxu0 0.0
        %451 = vmatprep.subr.mxu0 0.0
        %452 = vmatpush1.msra.mxu0 0.0
        %453 = vmatprep.subr.mxu0 0.0
        %454 = vmatpush1.msra.mxu0 0.0
        %455 = vmatprep.subr.mxu0 0.0
        %456 = vmatpush1.msra.mxu0 0.0
        %457 = vmatprep.subr.mxu0 0.0
        %458 = vmatpush1.msra.mxu0 0.0
        %459 = vmatprep.subr.mxu0 0.0
        %460 = vmatpush1.msra.mxu0 0.0
        %461 = vmatprep.subr.mxu0 0.0
        %462 = vmatpush1.msra.mxu0 0.0
        %463 = vmatprep.subr.mxu0 0.0
        %464 = vmatpush1.msra.mxu0 0.0
        %465 = vmatprep.subr.mxu0 0.0
        %466 = vmatpush1.msra.mxu0 0.0
        %467 = vmatprep.subr.mxu0 0.0
        %468 = vmatpush1.msra.mxu0 0.0
        %469 = vmatprep.subr.mxu0 0.0
        %470 = vmatpush1.msra.mxu0 0.0
        %471 = vmatprep.subr.mxu0 0.0
        %472 = vmatpush1.msra.mxu0 %v439
        %473 = vmatprep.subr.mxu0 0.0
        %474 = vmatpush2.msra.mxu0 0.0
        %475 = vmatprep.subr.mxu0 0.0
        %476 = vmatpush2.msra.mxu0 0.0
        %477 = vmatprep.subr.mxu0 0.0
        %478 = vmatpush2.msra.mxu0 0.0
        %479 = vmatprep.subr.mxu0 0.0
        %480 = vmatpush2.msra.mxu0 0.0
        %481 = vmatprep.subr.mxu0 0.0
        %482 = vmatpush2.msra.mxu0 0.0
        %483 = vmatprep.subr.mxu0 0.0
        %484 = vmatpush2.msra.mxu0 0.0
        %485 = vmatprep.subr.mxu0 0.0
        %486 = vmatpush2.msra.mxu0 0.0
        %487 = vmatprep.subr.mxu0 0.0
        %488 = vmatpush2.msra.mxu0 0.0
        %489 = vmatprep.subr.mxu0 0.0
        %490 = vmatpush2.msra.mxu0 0.0
        %491 = vmatprep.subr.mxu0 0.0
        %492 = vmatpush2.msra.mxu0 0.0
        %493 = vmatprep.subr.mxu0 0.0
        %494 = vmatpush2.msra.mxu0 0.0
        %495 = vmatprep.subr.mxu0 0.0
        %496 = vmatpush2.msra.mxu0 0.0
        %497 = vmatprep.subr.mxu0 0.0
        %498 = vmatpush2.msra.mxu0 0.0
        %499 = vmatprep.subr.mxu0 0.0
        %500 = vmatpush2.msra.mxu0 0.0
        %501 = vmatprep.subr.mxu0 0.0
        %502 = vmatpush2.msra.mxu0 0.0
        %503 = vmatprep.subr.mxu0 0.0
        %504 = vmatpush2.msra.mxu0 0.0
        %505 = vmatprep.mubr.f32.mxu0 0.0
        %506 = vmatmul.mubr.f32.gmra.mxu0 %v435
        %v507 = vpop.f32.mrf.mxu0
        %v508 = vadd.f32 0.0, %v507
        %v509 = vpop.f32.mrf.mxu0
        %510 = vdwg.mxu0
        %v512 = vrot.slane %v508, 1
        %v514 = vadd.f32 %v508, %v512
        %v515 = vxor.u32 %v514, 2147483648
        %v516 = vmul.f32 %v515, 1.442695
        %v517 = vpow.pop %v516
        %v518 = vadd.f32 %v517, 1.0
        %v519 = vrcp.pop %v518
        %v520 = vmul.f32 1.0, %v519
        %v521 = vlaneseq
        %v522 = vshrl.u32 %v521, 7
        %v523 = vsub.s32 0, %v522
        %v524 = vrot.slane %v520, %v523
        %526 = vbcast.lane.b32.xlu0 %v524, 256
        %v527 = vpop.permute.xlu0 %526
        %s529 = sor.u32 256, 8
        %530 = vbcast.lane.b32.xlu0 %v524, %s529
        %v531 = vpop.permute.xlu0 %530
        %s533 = sor.u32 256, 16
        %534 = vbcast.lane.b32.xlu0 %v524, %s533
        %v535 = vpop.permute.xlu0 %534
        %s537 = sor.u32 256, 24
        %538 = vbcast.lane.b32.xlu0 %v524, %s537
        %v539 = vpop.permute.xlu0 %538
        %v540 = vmul.f32 %v259, %v527
        %v541 = vmul.f32 %v260, %v527
        %v542 = vmul.f32 %v261, %v531
        %v543 = vmul.f32 %v262, %v531
        %v544 = vmul.f32 %v263, %v535
        %v545 = vmul.f32 %v264, %v535
        %v546 = vmul.f32 %v265, %v539
        %v547 = vmul.f32 %v266, %v539
        %v548 = vmax.f32 %v540, %v544
        %v549 = vmax.f32 %v542, %v546
        %v550 = vmax.f32 %v548, %v549
        %v551 = vrot.slane %v550, 4
        %v552 = vmax.f32 %v550, %v551
        %v553 = vrot.slane %v552, 2
        %v554 = vmax.f32 %v552, %v553
        %v555 = vrot.slane %v554, 1
        %v556 = vmax.f32 %v554, %v555
        %v557 = vmax.f32 %v541, %v545
        %v558 = vmax.f32 %v543, %v547
        %v559 = vmax.f32 %v557, %v558
        %v560 = vrot.slane %v559, 4
        %v561 = vmax.f32 %v559, %v560
        %v562 = vrot.slane %v561, 2
        %v563 = vmax.f32 %v561, %v562
        %v564 = vrot.slane %v563, 1
        %v565 = vmax.f32 %v563, %v564
        %v566 = vadd.f32 %v540, %v542
        %v567 = vadd.f32 %v566, %v544
        %v568 = vadd.f32 %v567, %v546
        %v569 = vrot.slane %v568, 4
        %v570 = vadd.f32 %v568, %v569
        %v571 = vrot.slane %v570, 2
        %v572 = vadd.f32 %v570, %v571
        %v573 = vrot.slane %v572, 1
        %v574 = vadd.f32 %v572, %v573
        %v575 = vadd.f32 %v541, %v543
        %v576 = vadd.f32 %v575, %v545
        %v577 = vadd.f32 %v576, %v547
        %v578 = vrot.slane %v577, 4
        %v579 = vadd.f32 %v577, %v578
        %v580 = vrot.slane %v579, 2
        %v581 = vadd.f32 %v579, %v580
        %v582 = vrot.slane %v581, 1
        %v583 = vadd.f32 %v581, %v582
        %v584 = vmul.f32 %v574, 0.03125
        %v585 = vmul.f32 %v583, 0.03125
        %586 = vrot.lane.b32.xlu0 %v556, 1
        %v587 = vpop.permute.xlu0 %586
        %588 = vrot.lane.b32.xlu0 %v565, 1
        %v589 = vpop.permute.xlu0 %588
        %vm590 = vcmp.lt.s32.totalorder %v300, 1
        %v591 = vsel %vm590, %v587, %v589
        %v592 = vsel %vm590, %v589, %v587
        %v593 = vmul.f32 %v592, %v257
        %v594 = vmul.f32 %v591, %v258
        %595 = vrot.lane.b32.xlu0 %v556, 127
        %v596 = vpop.permute.xlu0 %595
        %597 = vrot.lane.b32.xlu0 %v565, 127
        %v598 = vpop.permute.xlu0 %597
        %vm599 = vcmp.lt.s32.totalorder %v300, 127
        %v600 = vsel %vm599, %v596, %v598
        %v601 = vsel %vm599, %v598, %v596
        %v604 = vrot.slane %v257, 1
        %v605 = vrot.slane %v258, 1
        %v608 = vmul.f32 %v600, %v604
        %v609 = vmul.f32 %v601, %v605
        %610 = vrot.lane.b32.xlu0 %v584, 1
        %v611 = vpop.permute.xlu0 %610
        %612 = vrot.lane.b32.xlu0 %v585, 1
        %v613 = vpop.permute.xlu0 %612
        %v614 = vsel %vm590, %v611, %v613
        %v615 = vsel %vm590, %v613, %v611
        %v616 = vmul.f32 %v615, %v257
        %v617 = vmul.f32 %v614, %v258
        %618 = vrot.lane.b32.xlu0 %v584, 127
        %v619 = vpop.permute.xlu0 %618
        %620 = vrot.lane.b32.xlu0 %v585, 127
        %v621 = vpop.permute.xlu0 %620
        %v622 = vsel %vm599, %v619, %v621
        %v623 = vsel %vm599, %v621, %v619
        %v624 = vmul.f32 %v622, %v604
        %v625 = vmul.f32 %v623, %v605
        %s626 = sld [smem:[#allocation6 + $0x3]]
        %v627 = vstv %s626
        %v628 = vmul.f32 %v627, %v593
        %v629 = vmul.f32 %v627, %v594
        %s630 = sld [smem:[#allocation6 + $0x4]]
        %v631 = vstv %s630
        %v632 = vmul.f32 %v631, %v556
        %v633 = vmul.f32 %v631, %v565
        %v634 = vadd.f32 %v628, %v632
        %v635 = vadd.f32 %v629, %v633
        %s636 = sld [smem:[#allocation6 + $0x5]]
        %v637 = vstv %s636
        %v638 = vmul.f32 %v637, %v608
        %v639 = vmul.f32 %v637, %v609
        %v640 = vadd.f32 %v634, %v638
        %v641 = vadd.f32 %v635, %v639
        %s642 = sld [smem:[#allocation6 + $0xc]]
        %v643 = vstv %s642
        %v644 = vmul.f32 %v643, %v616
        %v645 = vmul.f32 %v643, %v617
        %v646 = vadd.f32 %v640, %v644
        %v647 = vadd.f32 %v641, %v645
        %s648 = sld [smem:[#allocation6 + $0xd]]
        %v649 = vstv %s648
        %v650 = vmul.f32 %v649, %v584
        %v651 = vmul.f32 %v649, %v585
        %v652 = vadd.f32 %v646, %v650
        %v653 = vadd.f32 %v647, %v651
        %s654 = sld [smem:[#allocation6 + $0xe]]
        %v655 = vstv %s654
        %v656 = vmul.f32 %v655, %v624
        %v657 = vmul.f32 %v655, %v625
        %v658 = vadd.f32 %v652, %v656
        %v659 = vadd.f32 %v653, %v657
        %s660 = sld [smem:[#allocation6]]
        %v661 = vstv %s660
        %v662 = vmul.f32 %v661, %v593
        %v663 = vmul.f32 %v661, %v594
        %s664 = sld [smem:[#allocation6 + $0x1]]
        %v665 = vstv %s664
        %v666 = vmul.f32 %v665, %v556
        %v667 = vmul.f32 %v665, %v565
        %v668 = vadd.f32 %v662, %v666
        %v669 = vadd.f32 %v663, %v667
        %s670 = sld [smem:[#allocation6 + $0x2]]
        %v671 = vstv %s670
        %v672 = vmul.f32 %v671, %v608
        %v673 = vmul.f32 %v671, %v609
        %v674 = vadd.f32 %v668, %v672
        %v675 = vadd.f32 %v669, %v673
        %s676 = sld [smem:[#allocation6 + $0x9]]
        %v677 = vstv %s676
        %v678 = vmul.f32 %v677, %v616
        %v679 = vmul.f32 %v677, %v617
        %v680 = vadd.f32 %v674, %v678
        %v681 = vadd.f32 %v675, %v679
        %s682 = sld [smem:[#allocation6 + $0xa]]
        %v683 = vstv %s682
        %v684 = vmul.f32 %v683, %v584
        %v685 = vmul.f32 %v683, %v585
        %v686 = vadd.f32 %v680, %v684
        %v687 = vadd.f32 %v681, %v685
        %s688 = sld [smem:[#allocation6 + $0xb]]
        %v689 = vstv %s688
        %v690 = vmul.f32 %v689, %v624
        %v691 = vmul.f32 %v689, %v625
        %v692 = vadd.f32 %v686, %v690
        %v693 = vadd.f32 %v687, %v691
        %694 = vrot.lane.b32.xlu0 %v692, 16
        %v695 = vpop.permute.xlu0 %694
        %696 = vrot.lane.b32.xlu0 %v693, 16
        %v697 = vpop.permute.xlu0 %696
        %vm698 = vcmp.lt.s32.totalorder %v300, 16
        %v699 = vsel %vm698, %v695, %v697
        %v700 = vsel %vm698, %v697, %v695
        %v701 = vrot.slane %v257, 2
        %v702 = vrot.slane %v258, 2
        %v705 = vmul.f32 %v700, %v701
        %v706 = vmul.f32 %v699, %v702
        %v707 = vadd.f32 %v658, %v705
        %v708 = vadd.f32 %v659, %v706
        %s709 = sld [smem:[#allocation6 + $0x6]]
        %v710 = vstv %s709
        %v711 = vmul.f32 %v710, %v593
        %v712 = vmul.f32 %v710, %v594
        %s713 = sld [smem:[#allocation6 + $0x7]]
        %v714 = vstv %s713
        %v715 = vmul.f32 %v714, %v556
        %v716 = vmul.f32 %v714, %v565
        %v717 = vadd.f32 %v711, %v715
        %v718 = vadd.f32 %v712, %v716
        %s719 = sld [smem:[#allocation6 + $0x8]]
        %v720 = vstv %s719
        %v721 = vmul.f32 %v720, %v608
        %v722 = vmul.f32 %v720, %v609
        %v723 = vadd.f32 %v717, %v721
        %v724 = vadd.f32 %v718, %v722
        %s725 = sld [smem:[#allocation6 + $0xf]]
        %v726 = vstv %s725
        %v727 = vmul.f32 %v726, %v616
        %v728 = vmul.f32 %v726, %v617
        %v729 = vadd.f32 %v723, %v727
        %v730 = vadd.f32 %v724, %v728
        %s731 = sld [smem:[#allocation6 + $0x10]]
        %v732 = vstv %s731
        %v733 = vmul.f32 %v732, %v584
        %v734 = vmul.f32 %v732, %v585
        %v735 = vadd.f32 %v729, %v733
        %v736 = vadd.f32 %v730, %v734
        %s737 = sld [smem:[#allocation6 + $0x11]]
        %v738 = vstv %s737
        %v739 = vmul.f32 %v738, %v624
        %v740 = vmul.f32 %v738, %v625
        %v741 = vadd.f32 %v735, %v739
        %v742 = vadd.f32 %v736, %v740
        %743 = vrot.lane.b32.xlu0 %v741, 112
        %v744 = vpop.permute.xlu0 %743
        %745 = vrot.lane.b32.xlu0 %v742, 112
        %v746 = vpop.permute.xlu0 %745
        %vm747 = vcmp.lt.s32.totalorder %v300, 112
        %v748 = vsel %vm747, %v744, %v746
        %v749 = vsel %vm747, %v746, %v744
        %v750 = vrot.slane %v257, 3
        %v751 = vrot.slane %v258, 3
        %v754 = vmul.f32 %v748, %v750
        %v755 = vmul.f32 %v749, %v751
        %v756 = vadd.f32 %v707, %v754
        %v757 = vadd.f32 %v708, %v755
        %v758 = vxor.u32 %v756, 2147483648
        %v759 = vxor.u32 %v757, 2147483648
        %v760 = vmul.f32 %v758, 1.442695
        %v761 = vpow.pop %v760
        %v762 = vmul.f32 %v759, 1.442695
        %v763 = vpow.pop %v762
        %v764 = vadd.f32 %v761, 1.0
        %v765 = vadd.f32 %v763, 1.0
        %v766 = vrcp.pop %v764
        %v767 = vmul.f32 1.0, %v766
        %v768 = vrcp.pop %v765
        %v769 = vmul.f32 1.0, %v768
        %v770 = vlaneseq
        %v771 = vshrl.u32 %v770, 7
        %v772 = vsub.s32 0, %v771
        %v773 = vrot.slane %v767, %v772
        %v774 = vlaneseq
        %v775 = vshrl.u32 %v774, 7
        %v776 = vsub.s32 0, %v775
        %v777 = vrot.slane %v769, %v776
        %v778 = vmul.f32 %v540, %v773
        %v779 = vmul.f32 %v541, %v777
        %v780 = vmul.f32 %v542, %v773
        %v781 = vmul.f32 %v543, %v777
        %v782 = vmul.f32 %v544, %v773
        %v783 = vmul.f32 %v545, %v777
        %v784 = vmul.f32 %v546, %v773
        %v785 = vmul.f32 %v547, %v777
        %786 = vst [vmem:[%s256] sm:$0xff] %v778
        %787 = vst [vmem:[%s256 + $0x8] sm:$0xff] %v779
        %788 = vst [vmem:[%s256 + $0x10] sm:$0xff] %v780
        %789 = vst [vmem:[%s256 + $0x18] sm:$0xff] %v781
        %790 = vst [vmem:[%s256 + $0x20] sm:$0xff] %v782
        %791 = vst [vmem:[%s256 + $0x28] sm:$0xff] %v783
        %792 = vst [vmem:[%s256 + $0x30] sm:$0xff] %v784
        %793 = vst [vmem:[%s256 + $0x38] sm:$0xff] %v785
        %s794 = sand.u32 %s141, 1
        %s795 = scalar_lea.sflag [#allocation4], %s794
        %s796 = sand.u32 %s141, 1
        %s797 = smul.addr %s796, 64
        %s798 = scalar_lea.vmem [#allocation7], %s797
        // Predicated region
        $region49: #{tpu_custom_call.1} parent=39 // pred_check
          %p799 = pneg %p151
        $region50: #{tpu_custom_call.1} parent=39 // pred_check_branch
          %801 = sbr.rel (%p799) target = $region52
        $region51: #{tpu_custom_call.1} parent=39 // pred_region
          %s803 = ssub.s32 1024, 1024
          %804 = vsyncadd %s795, %s803
          %s805 = smul.addr %s23, 8
          %s806 = smul.addr %s805, 128
          %s807 = scalar_lea.hbm %s5, %s806
          %s808 = sshll.u32 %s798, 4
          %s809 = int_to_ptr.vmem [resolvable:$true] %s808
          %814 = dma.vmem_to_hbm [thread:$0]  %s809, 1024, %s807, %s795, 256, 256, 16
        $region52: #{tpu_custom_call.1} parent=39 // pred_fallthru
          _
      $region40: #{tpu_custom_call.1} parent=5 // pred_fallthru
        _
      %p815 = scmp.le.s32.totalorder 2, %s18
      // Predicated region
      $region53: #{tpu_custom_call.1} parent=5 // pred_check
        %p816 = pneg %p815
      $region54: #{tpu_custom_call.1} parent=5 // pred_check_branch
        %818 = sbr.rel (%p816) target = $region56
      $region55: #{tpu_custom_call.1} parent=5 // pred_region
        %s819 = ssub.s32 %s18, 2
        // Predicated region
        $region57: #{tpu_custom_call.1} parent=55 // pred_check
          %p820 = pneg %p157
        $region58: #{tpu_custom_call.1} parent=55 // pred_check_branch
          %822 = sbr.rel (%p820) target = $region60
        $region59: #{tpu_custom_call.1} parent=55 // pred_region
          %s823 = sand.u32 %s142, 1
          %s824 = scalar_lea.sflag [#allocation4], %s823
          %s825 = sand.u32 %s142, 1
          %s826 = smul.addr %s825, 64
          %s827 = scalar_lea.vmem [#allocation7], %s826
          %828 = dma.done %s824, 1024
        $region60: #{tpu_custom_call.1} parent=55 // pred_fallthru
          _
      $region56: #{tpu_custom_call.1} parent=5 // pred_fallthru
        _
    $region6: #{tpu_custom_call.1} parent=1 // loop_footer
      %s22 = sadd.s32 1, %s18
    $region7: #{tpu_custom_call.1} parent=1 // loop_footer_branch
      %17 = sbr.rel target = $region3
    $region8: #{tpu_custom_call.1} parent=1 // loop_exit
      _
    %829 = vsyncpa [#allocation3], 1
    %s830 = scalar_lea.sflag [#allocation3], 1
    %831 = vsyncpa %s830, 1
    %832 = vsyncpa [#allocation4], 1
    %s833 = scalar_lea.sflag [#allocation4], 1
    %834 = vsyncpa %s833, 1
    %835 = vsyncpa [#allocation5], 1
    %s836 = scalar_lea.sflag [#allocation5], 1
    %837 = vsyncpa %s836, 1

</llo_original>
